<compile_context>
chip_gen: v7x
topology: tpu7x:2x2x1
jax: 0.10.0
libtpu: 0.0.40
codegen_flags: <defaults>
</compile_context>

<pallas_src>
import jax
import jax.numpy as jnp
import numpy as np
from jax.experimental import pallas as pl
from jax.experimental.pallas import tpu as pltpu

INT_DIM = 14


def make_kernel(B, L):
    BL = B * L

    def kernel(alphas_ref, v_ref,
               w_in_ref, b_in_ref,
               w1_ref, b1_ref,
               w2_ref, b2_ref,
               w3_ref, b3_ref,
               wl_ref, bl_ref,
               out_ref):
        # Batch-boundary masks for the shifted rows (computed once, reused by
        # every conv layer).  Row i of the (B*L, C) slab belongs to batch
        # i // L, position i % L.
        row = jax.lax.broadcasted_iota(jnp.int32, (BL, 1), 0)
        not_first = (row % L) != 0          # zero the x[l-1] tap at l == 0
        not_last = (row % L) != (L - 1)     # zero the x[l+1] tap at l == L-1

        def conv(x, w_ref, b_ref):
            # Conv1d(k=3, padding=1) as a single fused matmul.
            # pltpu.roll shifts along the sublane axis (XLU); masks implement
            # both the zero padding and the cross-batch isolation.
            xm = jnp.where(not_first, pltpu.roll(x, shift=1, axis=0), 0.0)       # x[l-1]
            xp = jnp.where(not_last, pltpu.roll(x, shift=BL - 1, axis=0), 0.0)   # x[l+1]
            xc = jnp.concatenate([xm, x, xp], axis=-1)                           # (BL, 3*Cin)
            return jnp.dot(xc, w_ref[...],
                           preferred_element_type=jnp.float32) + b_ref[...]

        def prelu(x, a):
            return jnp.where(x > 0.0, x, a * x)

        # PReLU slopes from SMEM (scalars), read once.
        a_in = alphas_ref[0]
        a1 = alphas_ref[1]
        a2 = alphas_ref[2]
        # alphas_ref[3] == pre3 exists in the module but is unused in forward.

        x = prelu(conv(v_ref[...], w_in_ref, b_in_ref), a_in)
        x = prelu(conv(x, w1_ref, b1_ref), a1) + x
        x = prelu(conv(x, w2_ref, b2_ref), a2) + x
        x = prelu(conv(x, w3_ref, b3_ref), a2) + x      # pre2 reused after gc3 (module quirk)
        y = jax.nn.sigmoid(conv(x, wl_ref, bl_ref))     # (B*L, nhid)

        # Emit directly in PyTorch output layout (B, nhid, L): per-batch
        # transpose of a tiny (L, nhid) tile, stored with a static index.
        for b in range(B):                               # B is tiny and static
            y_b = y[b * L:(b + 1) * L, :]                # (L, nhid)
            out_ref[b] = jnp.transpose(y_b, (1, 0)).astype(out_ref.dtype)

    return kernel


def cnn_baseline_forward(V, params):
    """V: (B, L, nfeat) float32.  Returns (B, nhid, L) (PyTorch layout)."""
    B, L, Cin = V.shape
    nhid = params["wl"].shape[2]

    # Flatten batch into the row axis (free reshape) and fuse the 3 conv taps
    # into the contraction dimension of each weight: (3, Cin, Cout) -> (3*Cin, Cout).
    v2 = V.reshape(B * L, Cin)
    w_in = params["w_in"].reshape(3 * Cin, INT_DIM)
    w1 = params["w1"].reshape(3 * INT_DIM, INT_DIM)
    w2 = params["w2"].reshape(3 * INT_DIM, INT_DIM)
    w3 = params["w3"].reshape(3 * INT_DIM, INT_DIM)
    wl = params["wl"].reshape(3 * INT_DIM, nhid)

    def vmem():
        return pl.BlockSpec(memory_space=pltpu.MemorySpace.VMEM)

    out = pl.pallas_call(
        make_kernel(B, L),
        out_shape=jax.ShapeDtypeStruct((B, nhid, L), jnp.float32),
        in_specs=[
            pl.BlockSpec(memory_space=pltpu.MemorySpace.SMEM),  # PReLU alphas
            vmem(),                                             # V slab (B*L, Cin)
            vmem(), vmem(),                                     # gc_in  w, b
            vmem(), vmem(),                                     # gc1    w, b
            vmem(), vmem(),                                     # gc2    w, b
            vmem(), vmem(),                                     # gc3    w, b
            vmem(), vmem(),                                     # cnn_label w, b
        ],
        out_specs=vmem(),
    )(params["alphas"], v2,
      w_in, params["b_in"],
      w1, params["b1"],
      w2, params["b2"],
      w3, params["b3"],
      wl, params["bl"])

    return out  # already (B, nhid, L)


def ref_forward(V, params):
    """Plain-JAX reference (same math) for correctness checking."""
    def conv(x, w, b):  # x: (B, L, Cin)
        xp = jnp.pad(x, ((0, 0), (1, 1), (0, 0)))
        return xp[:, :-2] @ w[0] + xp[:, 1:-1] @ w[1] + xp[:, 2:] @ w[2] + b

    def prelu(x, a):
        return jnp.where(x > 0, x, a * x)

    a = params["alphas"]
    x = prelu(conv(V, params["w_in"], params["b_in"]), a[0])
    x = prelu(conv(x, params["w1"], params["b1"]), a[1]) + x
    x = prelu(conv(x, params["w2"], params["b2"]), a[2]) + x
    x = prelu(conv(x, params["w3"], params["b3"]), a[2]) + x
    y = jax.nn.sigmoid(conv(x, params["wl"], params["bl"]))
    return jnp.transpose(y, (0, 2, 1))


def init_params(key, nfeat, nhid):
    ks = jax.random.split(key, 10)

    def conv_w(k, cin, cout):
        # stored as (3, Cin, Cout) = transpose of PyTorch (Cout, Cin, 3)
        return 0.1 * jax.random.normal(k, (3, cin, cout), jnp.float32)

    def conv_b(k, cout):
        return 0.1 * jax.random.normal(k, (1, cout), jnp.float32)

    return {
        "w_in": conv_w(ks[0], nfeat, INT_DIM), "b_in": conv_b(ks[1], INT_DIM),
        "w1": conv_w(ks[2], INT_DIM, INT_DIM), "b1": conv_b(ks[3], INT_DIM),
        "w2": conv_w(ks[4], INT_DIM, INT_DIM), "b2": conv_b(ks[5], INT_DIM),
        "w3": conv_w(ks[6], INT_DIM, INT_DIM), "b3": conv_b(ks[7], INT_DIM),
        "wl": conv_w(ks[8], INT_DIM, nhid),    "bl": conv_b(ks[9], nhid),
        # PReLU slopes (pre_in, pre1, pre2, pre3) — pre3 unused in forward.
        "alphas": jnp.array([0.25, 0.25, 0.25, 0.25], jnp.float32),
    }


if __name__ == "__main__":
    B, L, NFEAT, NHID = 2, 16, 4, 8     # small shapes consistent with the module
    key = jax.random.PRNGKey(0)
    k_v, k_p = jax.random.split(key)

    V = jax.random.normal(k_v, (B, L, NFEAT), jnp.float32)
    params = init_params(k_p, NFEAT, NHID)

    fwd = jax.jit(cnn_baseline_forward)
    out = jax.block_until_ready(fwd(V, params))

    ref = jax.block_until_ready(ref_forward(V, params))
    assert out.shape == (B, NHID, L)
    np.testing.assert_allclose(np.asarray(out), np.asarray(ref), rtol=1e-4, atol=1e-5)

    print("KERNEL_OK")
</pallas_src>

<mosaic_0001>
module attributes {stable_mosaic.version = 11 : i64} {
  func.func @kernel(%arg0: memref<4xf32, #tpu.memory_space<smem>>, %arg1: memref<32x4xf32, #tpu.memory_space<vmem>>, %arg2: memref<12x14xf32, #tpu.memory_space<vmem>>, %arg3: memref<1x14xf32, #tpu.memory_space<vmem>>, %arg4: memref<42x14xf32, #tpu.memory_space<vmem>>, %arg5: memref<1x14xf32, #tpu.memory_space<vmem>>, %arg6: memref<42x14xf32, #tpu.memory_space<vmem>>, %arg7: memref<1x14xf32, #tpu.memory_space<vmem>>, %arg8: memref<42x14xf32, #tpu.memory_space<vmem>>, %arg9: memref<1x14xf32, #tpu.memory_space<vmem>>, %arg10: memref<42x8xf32, #tpu.memory_space<vmem>>, %arg11: memref<1x8xf32, #tpu.memory_space<vmem>>, %arg12: memref<2x8x16xf32, #tpu.memory_space<vmem>>) attributes {dimension_semantics = [], scalar_prefetch = 0 : i64, scratch_operands = 0 : i64, tpu.core_type = #tpu.core_type<tc>} {
    %0 = tpu.iota {dimensions = array<i32: 0>} : vector<32x1xi32>
    %c16_i32 = arith.constant 16 : i32
    %c0_i32 = arith.constant 0 : i32
    %1 = arith.cmpi eq, %c16_i32, %c0_i32 : i32
    %c1_i32 = arith.constant 1 : i32
    %2 = arith.select %1, %c1_i32, %c16_i32 : i32
    %3 = vector.broadcast %2 : i32 to vector<32x1xi32>
    %4 = arith.remsi %0, %3 : vector<32x1xi32>
    %c0_i32_0 = arith.constant 0 : i32
    %5 = vector.broadcast %c0_i32_0 : i32 to vector<32x1xi32>
    %6 = arith.cmpi ne, %4, %5 : vector<32x1xi32>
    %c0_i32_1 = arith.constant 0 : i32
    %7 = vector.broadcast %c0_i32_1 : i32 to vector<32x1xi32>
    %8 = arith.cmpi slt, %4, %7 : vector<32x1xi32>
    %c0_i32_2 = arith.constant 0 : i32
    %9 = arith.cmpi slt, %2, %c0_i32_2 : i32
    %10 = vector.broadcast %9 : i1 to vector<32x1xi1>
    %11 = vector.broadcast %10 : vector<32x1xi1> to vector<32x1xi1>
    %12 = arith.xori %8, %11 : vector<32x1xi1>
    %13 = arith.andi %12, %6 : vector<32x1xi1>
    %14 = vector.broadcast %2 : i32 to vector<32x1xi32>
    %15 = arith.addi %4, %14 : vector<32x1xi32>
    %16 = arith.select %13, %15, %4 : vector<32x1xi1>, vector<32x1xi32>
    %c0_i32_3 = arith.constant 0 : i32
    %17 = vector.broadcast %c0_i32_3 : i32 to vector<32x1xi32>
    %18 = arith.cmpi ne, %16, %17 : vector<32x1xi32>
    %c16_i32_4 = arith.constant 16 : i32
    %c0_i32_5 = arith.constant 0 : i32
    %19 = arith.cmpi eq, %c16_i32_4, %c0_i32_5 : i32
    %c1_i32_6 = arith.constant 1 : i32
    %20 = arith.select %19, %c1_i32_6, %c16_i32_4 : i32
    %21 = vector.broadcast %20 : i32 to vector<32x1xi32>
    %22 = arith.remsi %0, %21 : vector<32x1xi32>
    %c0_i32_7 = arith.constant 0 : i32
    %23 = vector.broadcast %c0_i32_7 : i32 to vector<32x1xi32>
    %24 = arith.cmpi ne, %22, %23 : vector<32x1xi32>
    %c0_i32_8 = arith.constant 0 : i32
    %25 = vector.broadcast %c0_i32_8 : i32 to vector<32x1xi32>
    %26 = arith.cmpi slt, %22, %25 : vector<32x1xi32>
    %c0_i32_9 = arith.constant 0 : i32
    %27 = arith.cmpi slt, %20, %c0_i32_9 : i32
    %28 = vector.broadcast %27 : i1 to vector<32x1xi1>
    %29 = vector.broadcast %28 : vector<32x1xi1> to vector<32x1xi1>
    %30 = arith.xori %26, %29 : vector<32x1xi1>
    %31 = arith.andi %30, %24 : vector<32x1xi1>
    %32 = vector.broadcast %20 : i32 to vector<32x1xi32>
    %33 = arith.addi %22, %32 : vector<32x1xi32>
    %34 = arith.select %31, %33, %22 : vector<32x1xi1>, vector<32x1xi32>
    %c15_i32 = arith.constant 15 : i32
    %35 = vector.broadcast %c15_i32 : i32 to vector<32x1xi32>
    %36 = arith.cmpi ne, %34, %35 : vector<32x1xi32>
    %c0 = arith.constant 0 : index
    %37 = memref.load %arg0[%c0] : memref<4xf32, #tpu.memory_space<smem>>
    %c1 = arith.constant 1 : index
    %38 = memref.load %arg0[%c1] : memref<4xf32, #tpu.memory_space<smem>>
    %c2 = arith.constant 2 : index
    %39 = memref.load %arg0[%c2] : memref<4xf32, #tpu.memory_space<smem>>
    %c0_10 = arith.constant 0 : index
    %c0_11 = arith.constant 0 : index
    %40 = vector.load %arg1[%c0_10, %c0_11] : memref<32x4xf32, #tpu.memory_space<vmem>>, vector<32x4xf32>
    %c1_i32_12 = arith.constant 1 : i32
    %41 = tpu.dynamic_rotate %40 by %c1_i32_12 dim 0 : vector<32x4xf32>, i32 -> vector<32x4xf32>
    %cst = arith.constant 0.000000e+00 : f32
    %42 = vector.shape_cast %18 : vector<32x1xi1> to vector<32x1xi1>
    %43 = vector.broadcast %42 : vector<32x1xi1> to vector<32x4xi1>
    %44 = vector.broadcast %cst : f32 to vector<32x4xf32>
    %45 = arith.select %43, %41, %44 : vector<32x4xi1>, vector<32x4xf32>
    %c31_i32 = arith.constant 31 : i32
    %46 = tpu.dynamic_rotate %40 by %c31_i32 dim 0 : vector<32x4xf32>, i32 -> vector<32x4xf32>
    %cst_13 = arith.constant 0.000000e+00 : f32
    %47 = vector.shape_cast %36 : vector<32x1xi1> to vector<32x1xi1>
    %48 = vector.broadcast %47 : vector<32x1xi1> to vector<32x4xi1>
    %49 = vector.broadcast %cst_13 : f32 to vector<32x4xf32>
    %50 = arith.select %48, %46, %49 : vector<32x4xi1>, vector<32x4xf32>
    %51 = tpu.concatenate %45, %40, %50 in 1 : vector<32x4xf32>, vector<32x4xf32>, vector<32x4xf32> -> vector<32x12xf32>
    %c0_14 = arith.constant 0 : index
    %c0_15 = arith.constant 0 : index
    %52 = vector.load %arg2[%c0_14, %c0_15] : memref<12x14xf32, #tpu.memory_space<vmem>>, vector<12x14xf32>
    %cst_16 = arith.constant dense<0.000000e+00> : vector<32x14xf32>
    %53 = tpu.matmul %51, %52, %cst_16 {dimension_numbers = #tpu.dot_dimension_numbers<[1], [0], [0], [1], [0, 0, 1, 1], [], []>} : vector<32x12xf32>, vector<12x14xf32>, vector<32x14xf32> -> vector<32x14xf32>
    %c0_17 = arith.constant 0 : index
    %c0_18 = arith.constant 0 : index
    %54 = vector.load %arg3[%c0_17, %c0_18] : memref<1x14xf32, #tpu.memory_space<vmem>>, vector<1x14xf32>
    %55 = vector.broadcast %54 : vector<1x14xf32> to vector<32x14xf32>
    %56 = arith.addf %53, %55 : vector<32x14xf32>
    %cst_19 = arith.constant 0.000000e+00 : f32
    %57 = vector.broadcast %cst_19 : f32 to vector<32x14xf32>
    %58 = arith.cmpf ogt, %56, %57 : vector<32x14xf32>
    %59 = vector.broadcast %37 : f32 to vector<32x14xf32>
    %60 = arith.mulf %59, %56 : vector<32x14xf32>
    %61 = arith.select %58, %56, %60 : vector<32x14xi1>, vector<32x14xf32>
    %c1_i32_20 = arith.constant 1 : i32
    %62 = tpu.dynamic_rotate %61 by %c1_i32_20 dim 0 : vector<32x14xf32>, i32 -> vector<32x14xf32>
    %cst_21 = arith.constant 0.000000e+00 : f32
    %63 = vector.shape_cast %18 : vector<32x1xi1> to vector<32x1xi1>
    %64 = vector.broadcast %63 : vector<32x1xi1> to vector<32x14xi1>
    %65 = vector.broadcast %cst_21 : f32 to vector<32x14xf32>
    %66 = arith.select %64, %62, %65 : vector<32x14xi1>, vector<32x14xf32>
    %c31_i32_22 = arith.constant 31 : i32
    %67 = tpu.dynamic_rotate %61 by %c31_i32_22 dim 0 : vector<32x14xf32>, i32 -> vector<32x14xf32>
    %cst_23 = arith.constant 0.000000e+00 : f32
    %68 = vector.shape_cast %36 : vector<32x1xi1> to vector<32x1xi1>
    %69 = vector.broadcast %68 : vector<32x1xi1> to vector<32x14xi1>
    %70 = vector.broadcast %cst_23 : f32 to vector<32x14xf32>
    %71 = arith.select %69, %67, %70 : vector<32x14xi1>, vector<32x14xf32>
    %72 = tpu.concatenate %66, %61, %71 in 1 : vector<32x14xf32>, vector<32x14xf32>, vector<32x14xf32> -> vector<32x42xf32>
    %c0_24 = arith.constant 0 : index
    %c0_25 = arith.constant 0 : index
    %73 = vector.load %arg4[%c0_24, %c0_25] : memref<42x14xf32, #tpu.memory_space<vmem>>, vector<42x14xf32>
    %cst_26 = arith.constant dense<0.000000e+00> : vector<32x14xf32>
    %74 = tpu.matmul %72, %73, %cst_26 {dimension_numbers = #tpu.dot_dimension_numbers<[1], [0], [0], [1], [0, 0, 1, 1], [], []>} : vector<32x42xf32>, vector<42x14xf32>, vector<32x14xf32> -> vector<32x14xf32>
    %c0_27 = arith.constant 0 : index
    %c0_28 = arith.constant 0 : index
    %75 = vector.load %arg5[%c0_27, %c0_28] : memref<1x14xf32, #tpu.memory_space<vmem>>, vector<1x14xf32>
    %76 = vector.broadcast %75 : vector<1x14xf32> to vector<32x14xf32>
    %77 = arith.addf %74, %76 : vector<32x14xf32>
    %cst_29 = arith.constant 0.000000e+00 : f32
    %78 = vector.broadcast %cst_29 : f32 to vector<32x14xf32>
    %79 = arith.cmpf ogt, %77, %78 : vector<32x14xf32>
    %80 = vector.broadcast %38 : f32 to vector<32x14xf32>
    %81 = arith.mulf %80, %77 : vector<32x14xf32>
    %82 = arith.select %79, %77, %81 : vector<32x14xi1>, vector<32x14xf32>
    %83 = arith.addf %82, %61 : vector<32x14xf32>
    %c1_i32_30 = arith.constant 1 : i32
    %84 = tpu.dynamic_rotate %83 by %c1_i32_30 dim 0 : vector<32x14xf32>, i32 -> vector<32x14xf32>
    %cst_31 = arith.constant 0.000000e+00 : f32
    %85 = vector.shape_cast %18 : vector<32x1xi1> to vector<32x1xi1>
    %86 = vector.broadcast %85 : vector<32x1xi1> to vector<32x14xi1>
    %87 = vector.broadcast %cst_31 : f32 to vector<32x14xf32>
    %88 = arith.select %86, %84, %87 : vector<32x14xi1>, vector<32x14xf32>
    %c31_i32_32 = arith.constant 31 : i32
    %89 = tpu.dynamic_rotate %83 by %c31_i32_32 dim 0 : vector<32x14xf32>, i32 -> vector<32x14xf32>
    %cst_33 = arith.constant 0.000000e+00 : f32
    %90 = vector.shape_cast %36 : vector<32x1xi1> to vector<32x1xi1>
    %91 = vector.broadcast %90 : vector<32x1xi1> to vector<32x14xi1>
    %92 = vector.broadcast %cst_33 : f32 to vector<32x14xf32>
    %93 = arith.select %91, %89, %92 : vector<32x14xi1>, vector<32x14xf32>
    %94 = tpu.concatenate %88, %83, %93 in 1 : vector<32x14xf32>, vector<32x14xf32>, vector<32x14xf32> -> vector<32x42xf32>
    %c0_34 = arith.constant 0 : index
    %c0_35 = arith.constant 0 : index
    %95 = vector.load %arg6[%c0_34, %c0_35] : memref<42x14xf32, #tpu.memory_space<vmem>>, vector<42x14xf32>
    %cst_36 = arith.constant dense<0.000000e+00> : vector<32x14xf32>
    %96 = tpu.matmul %94, %95, %cst_36 {dimension_numbers = #tpu.dot_dimension_numbers<[1], [0], [0], [1], [0, 0, 1, 1], [], []>} : vector<32x42xf32>, vector<42x14xf32>, vector<32x14xf32> -> vector<32x14xf32>
    %c0_37 = arith.constant 0 : index
    %c0_38 = arith.constant 0 : index
    %97 = vector.load %arg7[%c0_37, %c0_38] : memref<1x14xf32, #tpu.memory_space<vmem>>, vector<1x14xf32>
    %98 = vector.broadcast %97 : vector<1x14xf32> to vector<32x14xf32>
    %99 = arith.addf %96, %98 : vector<32x14xf32>
    %cst_39 = arith.constant 0.000000e+00 : f32
    %100 = vector.broadcast %cst_39 : f32 to vector<32x14xf32>
    %101 = arith.cmpf ogt, %99, %100 : vector<32x14xf32>
    %102 = vector.broadcast %39 : f32 to vector<32x14xf32>
    %103 = arith.mulf %102, %99 : vector<32x14xf32>
    %104 = arith.select %101, %99, %103 : vector<32x14xi1>, vector<32x14xf32>
    %105 = arith.addf %104, %83 : vector<32x14xf32>
    %c1_i32_40 = arith.constant 1 : i32
    %106 = tpu.dynamic_rotate %105 by %c1_i32_40 dim 0 : vector<32x14xf32>, i32 -> vector<32x14xf32>
    %cst_41 = arith.constant 0.000000e+00 : f32
    %107 = vector.shape_cast %18 : vector<32x1xi1> to vector<32x1xi1>
    %108 = vector.broadcast %107 : vector<32x1xi1> to vector<32x14xi1>
    %109 = vector.broadcast %cst_41 : f32 to vector<32x14xf32>
    %110 = arith.select %108, %106, %109 : vector<32x14xi1>, vector<32x14xf32>
    %c31_i32_42 = arith.constant 31 : i32
    %111 = tpu.dynamic_rotate %105 by %c31_i32_42 dim 0 : vector<32x14xf32>, i32 -> vector<32x14xf32>
    %cst_43 = arith.constant 0.000000e+00 : f32
    %112 = vector.shape_cast %36 : vector<32x1xi1> to vector<32x1xi1>
    %113 = vector.broadcast %112 : vector<32x1xi1> to vector<32x14xi1>
    %114 = vector.broadcast %cst_43 : f32 to vector<32x14xf32>
    %115 = arith.select %113, %111, %114 : vector<32x14xi1>, vector<32x14xf32>
    %116 = tpu.concatenate %110, %105, %115 in 1 : vector<32x14xf32>, vector<32x14xf32>, vector<32x14xf32> -> vector<32x42xf32>
    %c0_44 = arith.constant 0 : index
    %c0_45 = arith.constant 0 : index
    %117 = vector.load %arg8[%c0_44, %c0_45] : memref<42x14xf32, #tpu.memory_space<vmem>>, vector<42x14xf32>
    %cst_46 = arith.constant dense<0.000000e+00> : vector<32x14xf32>
    %118 = tpu.matmul %116, %117, %cst_46 {dimension_numbers = #tpu.dot_dimension_numbers<[1], [0], [0], [1], [0, 0, 1, 1], [], []>} : vector<32x42xf32>, vector<42x14xf32>, vector<32x14xf32> -> vector<32x14xf32>
    %c0_47 = arith.constant 0 : index
    %c0_48 = arith.constant 0 : index
    %119 = vector.load %arg9[%c0_47, %c0_48] : memref<1x14xf32, #tpu.memory_space<vmem>>, vector<1x14xf32>
    %120 = vector.broadcast %119 : vector<1x14xf32> to vector<32x14xf32>
    %121 = arith.addf %118, %120 : vector<32x14xf32>
    %cst_49 = arith.constant 0.000000e+00 : f32
    %122 = vector.broadcast %cst_49 : f32 to vector<32x14xf32>
    %123 = arith.cmpf ogt, %121, %122 : vector<32x14xf32>
    %124 = vector.broadcast %39 : f32 to vector<32x14xf32>
    %125 = arith.mulf %124, %121 : vector<32x14xf32>
    %126 = arith.select %123, %121, %125 : vector<32x14xi1>, vector<32x14xf32>
    %127 = arith.addf %126, %105 : vector<32x14xf32>
    %c1_i32_50 = arith.constant 1 : i32
    %128 = tpu.dynamic_rotate %127 by %c1_i32_50 dim 0 : vector<32x14xf32>, i32 -> vector<32x14xf32>
    %cst_51 = arith.constant 0.000000e+00 : f32
    %129 = vector.shape_cast %18 : vector<32x1xi1> to vector<32x1xi1>
    %130 = vector.broadcast %129 : vector<32x1xi1> to vector<32x14xi1>
    %131 = vector.broadcast %cst_51 : f32 to vector<32x14xf32>
    %132 = arith.select %130, %128, %131 : vector<32x14xi1>, vector<32x14xf32>
    %c31_i32_52 = arith.constant 31 : i32
    %133 = tpu.dynamic_rotate %127 by %c31_i32_52 dim 0 : vector<32x14xf32>, i32 -> vector<32x14xf32>
    %cst_53 = arith.constant 0.000000e+00 : f32
    %134 = vector.shape_cast %36 : vector<32x1xi1> to vector<32x1xi1>
    %135 = vector.broadcast %134 : vector<32x1xi1> to vector<32x14xi1>
    %136 = vector.broadcast %cst_53 : f32 to vector<32x14xf32>
    %137 = arith.select %135, %133, %136 : vector<32x14xi1>, vector<32x14xf32>
    %138 = tpu.concatenate %132, %127, %137 in 1 : vector<32x14xf32>, vector<32x14xf32>, vector<32x14xf32> -> vector<32x42xf32>
    %c0_54 = arith.constant 0 : index
    %c0_55 = arith.constant 0 : index
    %139 = vector.load %arg10[%c0_54, %c0_55] : memref<42x8xf32, #tpu.memory_space<vmem>>, vector<42x8xf32>
    %cst_56 = arith.constant dense<0.000000e+00> : vector<32x8xf32>
    %140 = tpu.matmul %138, %139, %cst_56 {dimension_numbers = #tpu.dot_dimension_numbers<[1], [0], [0], [1], [0, 0, 1, 1], [], []>} : vector<32x42xf32>, vector<42x8xf32>, vector<32x8xf32> -> vector<32x8xf32>
    %c0_57 = arith.constant 0 : index
    %c0_58 = arith.constant 0 : index
    %141 = vector.load %arg11[%c0_57, %c0_58] : memref<1x8xf32, #tpu.memory_space<vmem>>, vector<1x8xf32>
    %142 = vector.broadcast %141 : vector<1x8xf32> to vector<32x8xf32>
    %143 = arith.addf %140, %142 : vector<32x8xf32>
    %144 = arith.negf %143 : vector<32x8xf32>
    %145 = math.exp %144 : vector<32x8xf32>
    %cst_59 = arith.constant 1.000000e+00 : f32
    %146 = vector.broadcast %cst_59 : f32 to vector<32x8xf32>
    %147 = arith.addf %146, %145 : vector<32x8xf32>
    %148 = arith.divf %146, %147 : vector<32x8xf32>
    %149 = vector.extract_strided_slice %148 {offsets = [0, 0], sizes = [16, 8], strides = [1, 1]} : vector<32x8xf32> to vector<16x8xf32>
    %150 = tpu.transpose %149, [1, 0] : vector<16x8xf32> -> vector<8x16xf32>
    %c0_60 = arith.constant 0 : index
    %c0_61 = arith.constant 0 : index
    %c0_62 = arith.constant 0 : index
    %151 = vector.load %arg12[%c0_60, %c0_61, %c0_62] : memref<2x8x16xf32, #tpu.memory_space<vmem>>, vector<1x8x16xf32>
    %152 = vector.shape_cast %151 : vector<1x8x16xf32> to vector<8x16xf32>
    %153 = vector.shape_cast %150 : vector<8x16xf32> to vector<1x8x16xf32>
    tpu.vector_store %arg12[%c0_60, %c0_61, %c0_62], %153 {strides = array<i32>} : memref<2x8x16xf32, #tpu.memory_space<vmem>>, vector<1x8x16xf32>,
    %154 = vector.extract_strided_slice %148 {offsets = [16, 0], sizes = [16, 8], strides = [1, 1]} : vector<32x8xf32> to vector<16x8xf32>
    %155 = tpu.transpose %154, [1, 0] : vector<16x8xf32> -> vector<8x16xf32>
    %c1_63 = arith.constant 1 : index
    %c0_64 = arith.constant 0 : index
    %c0_65 = arith.constant 0 : index
    %156 = vector.load %arg12[%c1_63, %c0_64, %c0_65] : memref<2x8x16xf32, #tpu.memory_space<vmem>>, vector<1x8x16xf32>
    %157 = vector.shape_cast %156 : vector<1x8x16xf32> to vector<8x16xf32>
    %158 = vector.shape_cast %155 : vector<8x16xf32> to vector<1x8x16xf32>
    tpu.vector_store %arg12[%c1_63, %c0_64, %c0_65], %158 {strides = array<i32>} : memref<2x8x16xf32, #tpu.memory_space<vmem>>, vector<1x8x16xf32>,
    return
  }
}

</mosaic_0001>

<llo_original>
// kernel: cnn_baseline_forward.1
$region0: #{cnn_baseline_forward.1}
  #allocation0 [shape = 'u32[]', space=smem, size = 0x4, offset = 0x4, fixed_abs, tag = 'smem constant byte address 0x4 - core index']
  #allocation1 [shape = 'u32[144,128]{1,0:T(1,128)}', space=vmem, size = 0x12000, scoped, tag = 'internal scratch']
  %s0 = inlined_call_operand.vmem [shape: f32[4], index: 0, kind: input, shape index: {}]
  %s1 = inlined_call_operand.vmem [shape: f32[32,4], index: 1, kind: input, shape index: {}]
  %s2 = inlined_call_operand.vmem [shape: f32[12,14], index: 2, kind: input, shape index: {}]
  %s3 = inlined_call_operand.vmem [shape: f32[1,14], index: 3, kind: input, shape index: {}]
  %s4 = inlined_call_operand.vmem [shape: f32[42,14], index: 4, kind: input, shape index: {}]
  %s5 = inlined_call_operand.vmem [shape: f32[1,14], index: 5, kind: input, shape index: {}]
  %s6 = inlined_call_operand.vmem [shape: f32[42,14], index: 6, kind: input, shape index: {}]
  %s7 = inlined_call_operand.vmem [shape: f32[1,14], index: 7, kind: input, shape index: {}]
  %s8 = inlined_call_operand.vmem [shape: f32[42,14], index: 8, kind: input, shape index: {}]
  %s9 = inlined_call_operand.vmem [shape: f32[1,14], index: 9, kind: input, shape index: {}]
  %s10 = inlined_call_operand.vmem [shape: f32[42,8], index: 10, kind: input, shape index: {}]
  %s11 = inlined_call_operand.vmem [shape: f32[1,8], index: 11, kind: input, shape index: {}]
  %s12 = inlined_call_operand.hbm [shape: f32[2,8,16], index: 12, kind: output, shape index: {}]
  %s13 = sld [smem:[#allocation0]]
  $region62: #{cnn_baseline_forward.1} parent=0
    _
  %s15 = ssub.s32 1, %s13
  %s16 = scalar_select 0, %s15, %s13
  $region1: #{cnn_baseline_forward.1} parent=0
    #allocation2 [shape = 'u8[512]{0}', space=smem, size = 0x200, scoped, tag = 'input window, operand 0, single buffered']
    #allocation3 [shape = 's32[1]{0}', space=sflag, size = 0x4, scoped, tag = 'scoped memory for cnn_baseline_forward.1']
    #allocation4 [shape = 's32[1]{0}', space=sflag, size = 0x4, scoped, tag = 'scoped memory for cnn_baseline_forward.1']
    #allocation5 [shape = 'u8[8192]{0}', space=vmem, size = 0x2000, scoped, tag = 'output window, operand 0, single buffered']
    %17 = vsyncpa [#allocation4], 0
    %18 = vsyncpa [#allocation3], 0
    // Predicated region
    $region2: #{cnn_baseline_forward.1} parent=1 // pred_check
      _
    $region3: #{cnn_baseline_forward.1} parent=1 // pred_check_branch
      %20 = sbr.rel (0) target = $region5
    $region4: #{cnn_baseline_forward.1} parent=1 // pred_region
      %s22 = ssub.s32 16, 16
      %23 = vsyncadd [#allocation4], %s22
      %s25 = sshll.u32 %s0, 4
      %s26 = int_to_ptr.vmem [resolvable:$true] %s25
      %28 = dma.vmem_to_smem %s26, 16, [#allocation2], [#allocation4]
    $region5: #{cnn_baseline_forward.1} parent=1 // pred_fallthru
      _
    // Predicated region
    $region6: #{cnn_baseline_forward.1} parent=1 // pred_check
      _
    $region7: #{cnn_baseline_forward.1} parent=1 // pred_check_branch
      %30 = sbr.rel (0) target = $region9
    $region8: #{cnn_baseline_forward.1} parent=1 // pred_region
      _
    $region9: #{cnn_baseline_forward.1} parent=1 // pred_fallthru
      _
    // Predicated region
    $region10: #{cnn_baseline_forward.1} parent=1 // pred_check
      _
    $region11: #{cnn_baseline_forward.1} parent=1 // pred_check_branch
      %32 = sbr.rel (0) target = $region13
    $region12: #{cnn_baseline_forward.1} parent=1 // pred_region
      _
    $region13: #{cnn_baseline_forward.1} parent=1 // pred_fallthru
      _
    // Predicated region
    $region14: #{cnn_baseline_forward.1} parent=1 // pred_check
      _
    $region15: #{cnn_baseline_forward.1} parent=1 // pred_check_branch
      %34 = sbr.rel (0) target = $region17
    $region16: #{cnn_baseline_forward.1} parent=1 // pred_region
      _
    $region17: #{cnn_baseline_forward.1} parent=1 // pred_fallthru
      _
    // Predicated region
    $region18: #{cnn_baseline_forward.1} parent=1 // pred_check
      _
    $region19: #{cnn_baseline_forward.1} parent=1 // pred_check_branch
      %36 = sbr.rel (0) target = $region21
    $region20: #{cnn_baseline_forward.1} parent=1 // pred_region
      _
    $region21: #{cnn_baseline_forward.1} parent=1 // pred_fallthru
      _
    // Predicated region
    $region22: #{cnn_baseline_forward.1} parent=1 // pred_check
      _
    $region23: #{cnn_baseline_forward.1} parent=1 // pred_check_branch
      %38 = sbr.rel (0) target = $region25
    $region24: #{cnn_baseline_forward.1} parent=1 // pred_region
      _
    $region25: #{cnn_baseline_forward.1} parent=1 // pred_fallthru
      _
    // Predicated region
    $region26: #{cnn_baseline_forward.1} parent=1 // pred_check
      _
    $region27: #{cnn_baseline_forward.1} parent=1 // pred_check_branch
      %40 = sbr.rel (0) target = $region29
    $region28: #{cnn_baseline_forward.1} parent=1 // pred_region
      _
    $region29: #{cnn_baseline_forward.1} parent=1 // pred_fallthru
      _
    // Predicated region
    $region30: #{cnn_baseline_forward.1} parent=1 // pred_check
      _
    $region31: #{cnn_baseline_forward.1} parent=1 // pred_check_branch
      %42 = sbr.rel (0) target = $region33
    $region32: #{cnn_baseline_forward.1} parent=1 // pred_region
      _
    $region33: #{cnn_baseline_forward.1} parent=1 // pred_fallthru
      _
    // Predicated region
    $region34: #{cnn_baseline_forward.1} parent=1 // pred_check
      _
    $region35: #{cnn_baseline_forward.1} parent=1 // pred_check_branch
      %44 = sbr.rel (0) target = $region37
    $region36: #{cnn_baseline_forward.1} parent=1 // pred_region
      _
    $region37: #{cnn_baseline_forward.1} parent=1 // pred_fallthru
      _
    // Predicated region
    $region38: #{cnn_baseline_forward.1} parent=1 // pred_check
      _
    $region39: #{cnn_baseline_forward.1} parent=1 // pred_check_branch
      %46 = sbr.rel (0) target = $region41
    $region40: #{cnn_baseline_forward.1} parent=1 // pred_region
      _
    $region41: #{cnn_baseline_forward.1} parent=1 // pred_fallthru
      _
    // Predicated region
    $region42: #{cnn_baseline_forward.1} parent=1 // pred_check
      _
    $region43: #{cnn_baseline_forward.1} parent=1 // pred_check_branch
      %48 = sbr.rel (0) target = $region45
    $region44: #{cnn_baseline_forward.1} parent=1 // pred_region
      _
    $region45: #{cnn_baseline_forward.1} parent=1 // pred_fallthru
      _
    // Predicated region
    $region46: #{cnn_baseline_forward.1} parent=1 // pred_check
      _
    $region47: #{cnn_baseline_forward.1} parent=1 // pred_check_branch
      %50 = sbr.rel (0) target = $region49
    $region48: #{cnn_baseline_forward.1} parent=1 // pred_region
      _
    $region49: #{cnn_baseline_forward.1} parent=1 // pred_fallthru
      _
    // Predicated region
    $region50: #{cnn_baseline_forward.1} parent=1 // pred_check
      _
    $region51: #{cnn_baseline_forward.1} parent=1 // pred_check_branch
      %52 = sbr.rel (0) target = $region53
    $region52: #{cnn_baseline_forward.1} parent=1 // pred_region
      %53 = dma.done [#allocation4], 16
    $region53: #{cnn_baseline_forward.1} parent=1 // pred_fallthru
      _
    %54 = sfence
    %v55 = vlaneseq
    %v56 = vshrl.u32 %v55, 7
    %v57 = vadd.s32 %v56, 8
    %v58 = vadd.s32 %v56, 16
    %v59 = vadd.s32 %v56, 24
    %vm60 = vcmp.lt.s32.totalorder %v56, 0
    %v61 = vsub.s32 0, %v56
    %v62 = vsel %vm60, %v61, %v56
    %v63 = vshrl.u32 %v62, 4
    %v64 = vand.u32 %v62, 15
    %v65 = vsub.s32 0, %v64
    %v66 = vsel %vm60, %v65, %v64
    %vm67 = vcmp.lt.s32.totalorder %v57, 0
    %v68 = vsub.s32 0, %v57
    %v69 = vsel %vm67, %v68, %v57
    %v70 = vshrl.u32 %v69, 4
    %v71 = vand.u32 %v69, 15
    %v72 = vsub.s32 0, %v71
    %v73 = vsel %vm67, %v72, %v71
    %vm74 = vcmp.lt.s32.totalorder %v58, 0
    %v75 = vsub.s32 0, %v58
    %v76 = vsel %vm74, %v75, %v58
    %v77 = vshrl.u32 %v76, 4
    %v78 = vand.u32 %v76, 15
    %v79 = vsub.s32 0, %v78
    %v80 = vsel %vm74, %v79, %v78
    %vm81 = vcmp.lt.s32.totalorder %v59, 0
    %v82 = vsub.s32 0, %v59
    %v83 = vsel %vm81, %v82, %v59
    %v84 = vshrl.u32 %v83, 4
    %v85 = vand.u32 %v83, 15
    %v86 = vsub.s32 0, %v85
    %v87 = vsel %vm81, %v86, %v85
    %vm88 = vcmp.ne.s32.totalorder %v66, 0
    %vm89 = vcmp.ne.s32.totalorder %v73, 0
    %vm90 = vcmp.ne.s32.totalorder %v80, 0
    %vm91 = vcmp.ne.s32.totalorder %v87, 0
    %vm92 = vcmp.lt.s32.totalorder %v66, 0
    %vm93 = vcmp.lt.s32.totalorder %v73, 0
    %vm94 = vcmp.lt.s32.totalorder %v80, 0
    %vm95 = vcmp.lt.s32.totalorder %v87, 0
    %vm96 = vmand %vm92, %vm88
    %vm97 = vmand %vm93, %vm89
    %vm98 = vmand %vm94, %vm90
    %vm99 = vmand %vm95, %vm91
    %v100 = vadd.s32 %v66, 16
    %v101 = vadd.s32 %v73, 16
    %v102 = vadd.s32 %v80, 16
    %v103 = vadd.s32 %v87, 16
    %v104 = vsel %vm96, %v100, %v66
    %v105 = vsel %vm97, %v101, %v73
    %v106 = vsel %vm98, %v102, %v80
    %v107 = vsel %vm99, %v103, %v87
    %vm108 = vcmp.ne.s32.totalorder %v104, 0
    %vm109 = vcmp.ne.s32.totalorder %v105, 0
    %vm110 = vcmp.ne.s32.totalorder %v106, 0
    %vm111 = vcmp.ne.s32.totalorder %v107, 0
    %vm112 = vcmp.ne.s32.totalorder %v104, 15
    %vm113 = vcmp.ne.s32.totalorder %v105, 15
    %vm114 = vcmp.ne.s32.totalorder %v106, 15
    %vm115 = vcmp.ne.s32.totalorder %v107, 15
    %s116 = sld [smem:[#allocation2]]
    %s117 = sld [smem:[#allocation2 + $0x1]]
    %s118 = sld [smem:[#allocation2 + $0x2]]
    %v119 = vld [vmem:[%s1] sm:$0xff]
    %v120 = vld [vmem:[%s1 + $0x8] sm:$0xff]
    %v121 = vld [vmem:[%s1 + $0x10] sm:$0xff]
    %v122 = vld [vmem:[%s1 + $0x18] sm:$0xff]
    %v123 = vrot.slane %v119, 7
    %v124 = vrot.slane %v120, 7
    %v125 = vrot.slane %v121, 7
    %v126 = vrot.slane %v122, 7
    %vm127 = vcmp.lt.s32.totalorder %v56, 1
    %v128 = vsel %vm127, %v125, %v126
    %v129 = vsel %vm127, %v124, %v125
    %v130 = vsel %vm127, %v123, %v124
    %v131 = vsel %vm127, %v126, %v123
    %v132 = vsel %vm108, 1, 0
    %v133 = vsel %vm109, 1, 0
    %v134 = vsel %vm110, 1, 0
    %v135 = vsel %vm111, 1, 0
    %vm136 = vcmp.eq.s32.totalorder %v132, 1
    %vm137 = vcmp.eq.s32.totalorder %v133, 1
    %vm138 = vcmp.eq.s32.totalorder %v134, 1
    %vm139 = vcmp.eq.s32.totalorder %v135, 1
    %v140 = vsel %vm136, %v131, 0.0
    %v141 = vsel %vm137, %v130, 0.0
    %v142 = vsel %vm138, %v129, 0.0
    %v143 = vsel %vm139, %v128, 0.0
    %v144 = vrot.slane %v119, 1
    %v145 = vrot.slane %v120, 1
    %v146 = vrot.slane %v121, 1
    %v147 = vrot.slane %v122, 1
    %vm148 = vcmp.lt.s32.totalorder %v56, 7
    %v149 = vsel %vm148, %v146, %v147
    %v150 = vsel %vm148, %v145, %v146
    %v151 = vsel %vm148, %v144, %v145
    %v152 = vsel %vm148, %v147, %v144
    %v153 = vsel %vm112, 1, 0
    %v154 = vsel %vm113, 1, 0
    %v155 = vsel %vm114, 1, 0
    %v156 = vsel %vm115, 1, 0
    %vm157 = vcmp.eq.s32.totalorder %v153, 1
    %vm158 = vcmp.eq.s32.totalorder %v154, 1
    %vm159 = vcmp.eq.s32.totalorder %v155, 1
    %vm160 = vcmp.eq.s32.totalorder %v156, 1
    %v161 = vsel %vm157, %v151, 0.0
    %v162 = vsel %vm158, %v150, 0.0
    %v163 = vsel %vm159, %v149, 0.0
    %v164 = vsel %vm160, %v152, 0.0
    %169 = vrot.lane.b32.xlu0 %v119, 4
    %v170 = vpop.permute.xlu0 %169
    %171 = vrot.lane.b32.xlu0 %v120, 4
    %v172 = vpop.permute.xlu0 %171
    %173 = vrot.lane.b32.xlu0 %v121, 4
    %v174 = vpop.permute.xlu0 %173
    %175 = vrot.lane.b32.xlu0 %v122, 4
    %v176 = vpop.permute.xlu0 %175
    %185 = vrot.lane.b32.xlu0 %v161, 8
    %v186 = vpop.permute.xlu0 %185
    %187 = vrot.lane.b32.xlu0 %v162, 8
    %v188 = vpop.permute.xlu0 %187
    %189 = vrot.lane.b32.xlu0 %v163, 8
    %v190 = vpop.permute.xlu0 %189
    %191 = vrot.lane.b32.xlu0 %v164, 8
    %v192 = vpop.permute.xlu0 %191
    %vm197 = vcmask 31744
    %v198 = vsel %vm197, %v140, %v170
    %v199 = vsel %vm197, %v141, %v172
    %v200 = vsel %vm197, %v142, %v174
    %v201 = vsel %vm197, %v143, %v176
    %vm202 = vcmask 64512
    %v203 = vsel %vm202, %v198, %v186
    %v204 = vsel %vm202, %v199, %v188
    %v205 = vsel %vm202, %v200, %v190
    %v206 = vsel %vm202, %v201, %v192
    %v207 = vld [vmem:[%s2] sm:$0xff]
    %v208 = vld [vmem:[%s2 + $0x8] sm:$0xf]
    %v209 = vld [vmem:[%s3] sm:$0x1]
    %v211 = vlaneseq
    %v212 = vshrl.u32 %v211, 7
    %v213 = vsub.s32 0, %v212
    %v214 = vrot.slane %v209, %v213
    %vm216 = vcmask 97280
    %v218 = vsel %vm216, %v203, 0
    %v221 = vsel %vm216, %v204, 0
    %v224 = vsel %vm216, %v205, 0
    %v227 = vsel %vm216, %v206, 0
    %vm229 = vcmask 1043456
    %v231 = vsel %vm229, %v208, 0
    %233 = vmatprep.subr.mxu0 0.0
    %234 = vmatpush1.msra.mxu0 %v207
    %235 = vmatprep.subr.mxu0 0.0
    %236 = vmatpush1.msra.mxu0 %v231
    %237 = vmatprep.subr.mxu0 0.0
    %238 = vmatpush1.msra.mxu0 0.0
    %239 = vmatprep.subr.mxu0 0.0
    %240 = vmatpush1.msra.mxu0 0.0
    %241 = vmatprep.subr.mxu0 0.0
    %242 = vmatpush1.msra.mxu0 0.0
    %243 = vmatprep.subr.mxu0 0.0
    %244 = vmatpush1.msra.mxu0 0.0
    %245 = vmatprep.subr.mxu0 0.0
    %246 = vmatpush1.msra.mxu0 0.0
    %247 = vmatprep.subr.mxu0 0.0
    %248 = vmatpush1.msra.mxu0 0.0
    %249 = vmatprep.subr.mxu0 0.0
    %250 = vmatpush1.msra.mxu0 0.0
    %251 = vmatprep.subr.mxu0 0.0
    %252 = vmatpush1.msra.mxu0 0.0
    %253 = vmatprep.subr.mxu0 0.0
    %254 = vmatpush1.msra.mxu0 0.0
    %255 = vmatprep.subr.mxu0 0.0
    %256 = vmatpush1.msra.mxu0 0.0
    %257 = vmatprep.subr.mxu0 0.0
    %258 = vmatpush1.msra.mxu0 0.0
    %259 = vmatprep.subr.mxu0 0.0
    %260 = vmatpush1.msra.mxu0 0.0
    %261 = vmatprep.subr.mxu0 0.0
    %262 = vmatpush1.msra.mxu0 0.0
    %263 = vmatprep.subr.mxu0 0.0
    %264 = vmatpush1.msra.mxu0 0.0
    %265 = vmatprep.subr.mxu0 0.0
    %266 = vmatpush1.msra.mxu0 0.0
    %267 = vmatprep.subr.mxu0 0.0
    %268 = vmatpush1.msra.mxu0 0.0
    %269 = vmatprep.subr.mxu0 0.0
    %270 = vmatpush1.msra.mxu0 0.0
    %271 = vmatprep.subr.mxu0 0.0
    %272 = vmatpush1.msra.mxu0 0.0
    %273 = vmatprep.subr.mxu0 0.0
    %274 = vmatpush1.msra.mxu0 0.0
    %275 = vmatprep.subr.mxu0 0.0
    %276 = vmatpush1.msra.mxu0 0.0
    %277 = vmatprep.subr.mxu0 0.0
    %278 = vmatpush1.msra.mxu0 0.0
    %279 = vmatprep.subr.mxu0 0.0
    %280 = vmatpush1.msra.mxu0 0.0
    %281 = vmatprep.subr.mxu0 0.0
    %282 = vmatpush1.msra.mxu0 0.0
    %283 = vmatprep.subr.mxu0 0.0
    %284 = vmatpush1.msra.mxu0 0.0
    %285 = vmatprep.subr.mxu0 0.0
    %286 = vmatpush1.msra.mxu0 0.0
    %287 = vmatprep.subr.mxu0 0.0
    %288 = vmatpush1.msra.mxu0 0.0
    %289 = vmatprep.subr.mxu0 0.0
    %290 = vmatpush1.msra.mxu0 0.0
    %291 = vmatprep.subr.mxu0 0.0
    %292 = vmatpush1.msra.mxu0 0.0
    %293 = vmatprep.subr.mxu0 0.0
    %294 = vmatpush1.msra.mxu0 0.0
    %295 = vmatprep.subr.mxu0 0.0
    %296 = vmatpush1.msra.mxu0 0.0
    %297 = vmatprep.mubr.f32.mxu0 0.0
    %298 = vmatmul.mubr.f32.gmra.mrb[0].mxu0 %v218
    %v299 = vpop.f32.mrb[0].mxu0
    %v300 = vadd.f32 %v214, %v299
    %v301 = vpop.f32.mrb[0].mxu0
    %302 = vmatprep.mubr.f32.mxu0 0.0
    %303 = vmatmul.mubr.f32.gmra.mrb[0].mxu0 %v221
    %v304 = vpop.f32.mrb[0].mxu0
    %v305 = vadd.f32 %v214, %v304
    %v306 = vpop.f32.mrb[0].mxu0
    %307 = vmatprep.mubr.f32.mxu0 0.0
    %308 = vmatmul.mubr.f32.gmra.mrb[0].mxu0 %v224
    %v309 = vpop.f32.mrb[0].mxu0
    %v310 = vadd.f32 %v214, %v309
    %v311 = vpop.f32.mrb[0].mxu0
    %312 = vmatprep.mubr.f32.mxu0 0.0
    %313 = vmatmul.mubr.f32.gmra.mrb[0].mxu0 %v227
    %v314 = vpop.f32.mrb[0].mxu0
    %v315 = vadd.f32 %v214, %v314
    %v316 = vpop.f32.mrb[0].mxu0
    %317 = vdwg.mxu0
    %vm318 = vcmp.gt.f32.partialorder %v300, 0.0
    %vm319 = vcmp.gt.f32.partialorder %v305, 0.0
    %vm320 = vcmp.gt.f32.partialorder %v310, 0.0
    %vm321 = vcmp.gt.f32.partialorder %v315, 0.0
    %v322 = vstv %s116
    %v323 = vmul.f32 %v322, %v300
    %v324 = vmul.f32 %v322, %v305
    %v325 = vmul.f32 %v322, %v310
    %v326 = vmul.f32 %v322, %v315
    %v327 = vsel %vm318, %v300, %v323
    %v328 = vsel %vm319, %v305, %v324
    %v329 = vsel %vm320, %v310, %v325
    %v330 = vsel %vm321, %v315, %v326
    %v331 = vrot.slane %v327, 7
    %v332 = vrot.slane %v328, 7
    %v333 = vrot.slane %v329, 7
    %v334 = vrot.slane %v330, 7
    %v335 = vsel %vm127, %v333, %v334
    %v336 = vsel %vm127, %v332, %v333
    %v337 = vsel %vm127, %v331, %v332
    %v338 = vsel %vm127, %v334, %v331
    %v339 = vsel %vm136, %v338, 0.0
    %v340 = vsel %vm137, %v337, 0.0
    %v341 = vsel %vm138, %v336, 0.0
    %v342 = vsel %vm139, %v335, 0.0
    %v343 = vrot.slane %v327, 1
    %v344 = vrot.slane %v328, 1
    %v345 = vrot.slane %v329, 1
    %v346 = vrot.slane %v330, 1
    %v347 = vsel %vm148, %v345, %v346
    %v348 = vsel %vm148, %v344, %v345
    %v349 = vsel %vm148, %v343, %v344
    %v350 = vsel %vm148, %v346, %v343
    %v351 = vsel %vm157, %v349, 0.0
    %v352 = vsel %vm158, %v348, 0.0
    %v353 = vsel %vm159, %v347, 0.0
    %v354 = vsel %vm160, %v350, 0.0
    %359 = vrot.lane.b32.xlu0 %v327, 14
    %v360 = vpop.permute.xlu0 %359
    %361 = vrot.lane.b32.xlu0 %v328, 14
    %v362 = vpop.permute.xlu0 %361
    %363 = vrot.lane.b32.xlu0 %v329, 14
    %v364 = vpop.permute.xlu0 %363
    %365 = vrot.lane.b32.xlu0 %v330, 14
    %v366 = vpop.permute.xlu0 %365
    %375 = vrot.lane.b32.xlu0 %v351, 28
    %v376 = vpop.permute.xlu0 %375
    %377 = vrot.lane.b32.xlu0 %v352, 28
    %v378 = vpop.permute.xlu0 %377
    %379 = vrot.lane.b32.xlu0 %v353, 28
    %v380 = vpop.permute.xlu0 %379
    %381 = vrot.lane.b32.xlu0 %v354, 28
    %v382 = vpop.permute.xlu0 %381
    %vm387 = vcmask 113664
    %v388 = vsel %vm387, %v339, %v360
    %v389 = vsel %vm387, %v340, %v362
    %v390 = vsel %vm387, %v341, %v364
    %v391 = vsel %vm387, %v342, %v366
    %vm392 = vcmask 228352
    %v393 = vsel %vm392, %v388, %v376
    %v394 = vsel %vm392, %v389, %v378
    %v395 = vsel %vm392, %v390, %v380
    %v396 = vsel %vm392, %v391, %v382
    %v397 = vld [vmem:[%s4] sm:$0xff]
    %v398 = vld [vmem:[%s4 + $0x8] sm:$0xff]
    %v399 = vld [vmem:[%s4 + $0x10] sm:$0xff]
    %v400 = vld [vmem:[%s4 + $0x18] sm:$0xff]
    %v401 = vld [vmem:[%s4 + $0x20] sm:$0xff]
    %v402 = vld [vmem:[%s4 + $0x28] sm:$0x3]
    %v403 = vld [vmem:[%s5] sm:$0x1]
    %v405 = vlaneseq
    %v406 = vshrl.u32 %v405, 7
    %v407 = vsub.s32 0, %v406
    %v408 = vrot.slane %v403, %v407
    %vm410 = vcmask 343040
    %v412 = vsel %vm410, %v393, 0
    %v415 = vsel %vm410, %v394, 0
    %v418 = vsel %vm410, %v395, 0
    %v421 = vsel %vm410, %v396, 0
    %vm423 = vcmask 1041408
    %v425 = vsel %vm423, %v402, 0
    %427 = vmatprep.subr.mxu0 0.0
    %428 = vmatpush1.msra.mxu0 %v397
    %429 = vmatprep.subr.mxu0 0.0
    %430 = vmatpush1.msra.mxu0 %v398
    %431 = vmatprep.subr.mxu0 0.0
    %432 = vmatpush1.msra.mxu0 %v399
    %433 = vmatprep.subr.mxu0 0.0
    %434 = vmatpush1.msra.mxu0 %v400
    %435 = vmatprep.subr.mxu0 0.0
    %436 = vmatpush1.msra.mxu0 %v401
    %437 = vmatprep.subr.mxu0 0.0
    %438 = vmatpush1.msra.mxu0 %v425
    %439 = vmatprep.subr.mxu0 0.0
    %440 = vmatpush1.msra.mxu0 0.0
    %441 = vmatprep.subr.mxu0 0.0
    %442 = vmatpush1.msra.mxu0 0.0
    %443 = vmatprep.subr.mxu0 0.0
    %444 = vmatpush1.msra.mxu0 0.0
    %445 = vmatprep.subr.mxu0 0.0
    %446 = vmatpush1.msra.mxu0 0.0
    %447 = vmatprep.subr.mxu0 0.0
    %448 = vmatpush1.msra.mxu0 0.0
    %449 = vmatprep.subr.mxu0 0.0
    %450 = vmatpush1.msra.mxu0 0.0
    %451 = vmatprep.subr.mxu0 0.0
    %452 = vmatpush1.msra.mxu0 0.0
    %453 = vmatprep.subr.mxu0 0.0
    %454 = vmatpush1.msra.mxu0 0.0
    %455 = vmatprep.subr.mxu0 0.0
    %456 = vmatpush1.msra.mxu0 0.0
    %457 = vmatprep.subr.mxu0 0.0
    %458 = vmatpush1.msra.mxu0 0.0
    %459 = vmatprep.subr.mxu0 0.0
    %460 = vmatpush1.msra.mxu0 0.0
    %461 = vmatprep.subr.mxu0 0.0
    %462 = vmatpush1.msra.mxu0 0.0
    %463 = vmatprep.subr.mxu0 0.0
    %464 = vmatpush1.msra.mxu0 0.0
    %465 = vmatprep.subr.mxu0 0.0
    %466 = vmatpush1.msra.mxu0 0.0
    %467 = vmatprep.subr.mxu0 0.0
    %468 = vmatpush1.msra.mxu0 0.0
    %469 = vmatprep.subr.mxu0 0.0
    %470 = vmatpush1.msra.mxu0 0.0
    %471 = vmatprep.subr.mxu0 0.0
    %472 = vmatpush1.msra.mxu0 0.0
    %473 = vmatprep.subr.mxu0 0.0
    %474 = vmatpush1.msra.mxu0 0.0
    %475 = vmatprep.subr.mxu0 0.0
    %476 = vmatpush1.msra.mxu0 0.0
    %477 = vmatprep.subr.mxu0 0.0
    %478 = vmatpush1.msra.mxu0 0.0
    %479 = vmatprep.subr.mxu0 0.0
    %480 = vmatpush1.msra.mxu0 0.0
    %481 = vmatprep.subr.mxu0 0.0
    %482 = vmatpush1.msra.mxu0 0.0
    %483 = vmatprep.subr.mxu0 0.0
    %484 = vmatpush1.msra.mxu0 0.0
    %485 = vmatprep.subr.mxu0 0.0
    %486 = vmatpush1.msra.mxu0 0.0
    %487 = vmatprep.subr.mxu0 0.0
    %488 = vmatpush1.msra.mxu0 0.0
    %489 = vmatprep.subr.mxu0 0.0
    %490 = vmatpush1.msra.mxu0 0.0
    %491 = vmatprep.mubr.f32.mxu0 0.0
    %492 = vmatmul.mubr.f32.gmra.mrb[0].mxu0 %v412
    %v493 = vpop.f32.mrb[0].mxu0
    %v494 = vadd.f32 %v408, %v493
    %v495 = vpop.f32.mrb[0].mxu0
    %496 = vmatprep.mubr.f32.mxu0 0.0
    %497 = vmatmul.mubr.f32.gmra.mrb[0].mxu0 %v415
    %v498 = vpop.f32.mrb[0].mxu0
    %v499 = vadd.f32 %v408, %v498
    %v500 = vpop.f32.mrb[0].mxu0
    %501 = vmatprep.mubr.f32.mxu0 0.0
    %502 = vmatmul.mubr.f32.gmra.mrb[0].mxu0 %v418
    %v503 = vpop.f32.mrb[0].mxu0
    %v504 = vadd.f32 %v408, %v503
    %v505 = vpop.f32.mrb[0].mxu0
    %506 = vmatprep.mubr.f32.mxu0 0.0
    %507 = vmatmul.mubr.f32.gmra.mrb[0].mxu0 %v421
    %v508 = vpop.f32.mrb[0].mxu0
    %v509 = vadd.f32 %v408, %v508
    %v510 = vpop.f32.mrb[0].mxu0
    %511 = vdwg.mxu0
    %vm512 = vcmp.gt.f32.partialorder %v494, 0.0
    %vm513 = vcmp.gt.f32.partialorder %v499, 0.0
    %vm514 = vcmp.gt.f32.partialorder %v504, 0.0
    %vm515 = vcmp.gt.f32.partialorder %v509, 0.0
    %v516 = vstv %s117
    %v517 = vmul.f32 %v516, %v494
    %v518 = vmul.f32 %v516, %v499
    %v519 = vmul.f32 %v516, %v504
    %v520 = vmul.f32 %v516, %v509
    %v521 = vsel %vm512, %v494, %v517
    %v522 = vsel %vm513, %v499, %v518
    %v523 = vsel %vm514, %v504, %v519
    %v524 = vsel %vm515, %v509, %v520
    %v525 = vadd.f32 %v521, %v327
    %v526 = vadd.f32 %v522, %v328
    %v527 = vadd.f32 %v523, %v329
    %v528 = vadd.f32 %v524, %v330
    %v529 = vrot.slane %v525, 7
    %v530 = vrot.slane %v526, 7
    %v531 = vrot.slane %v527, 7
    %v532 = vrot.slane %v528, 7
    %v533 = vsel %vm127, %v531, %v532
    %v534 = vsel %vm127, %v530, %v531
    %v535 = vsel %vm127, %v529, %v530
    %v536 = vsel %vm127, %v532, %v529
    %v537 = vsel %vm136, %v536, 0.0
    %v538 = vsel %vm137, %v535, 0.0
    %v539 = vsel %vm138, %v534, 0.0
    %v540 = vsel %vm139, %v533, 0.0
    %v541 = vrot.slane %v525, 1
    %v542 = vrot.slane %v526, 1
    %v543 = vrot.slane %v527, 1
    %v544 = vrot.slane %v528, 1
    %v545 = vsel %vm148, %v543, %v544
    %v546 = vsel %vm148, %v542, %v543
    %v547 = vsel %vm148, %v541, %v542
    %v548 = vsel %vm148, %v544, %v541
    %v549 = vsel %vm157, %v547, 0.0
    %v550 = vsel %vm158, %v546, 0.0
    %v551 = vsel %vm159, %v545, 0.0
    %v552 = vsel %vm160, %v548, 0.0
    %557 = vrot.lane.b32.xlu0 %v525, 14
    %v558 = vpop.permute.xlu0 %557
    %559 = vrot.lane.b32.xlu0 %v526, 14
    %v560 = vpop.permute.xlu0 %559
    %561 = vrot.lane.b32.xlu0 %v527, 14
    %v562 = vpop.permute.xlu0 %561
    %563 = vrot.lane.b32.xlu0 %v528, 14
    %v564 = vpop.permute.xlu0 %563
    %573 = vrot.lane.b32.xlu0 %v549, 28
    %v574 = vpop.permute.xlu0 %573
    %575 = vrot.lane.b32.xlu0 %v550, 28
    %v576 = vpop.permute.xlu0 %575
    %577 = vrot.lane.b32.xlu0 %v551, 28
    %v578 = vpop.permute.xlu0 %577
    %579 = vrot.lane.b32.xlu0 %v552, 28
    %v580 = vpop.permute.xlu0 %579
    %v585 = vsel %vm387, %v537, %v558
    %v586 = vsel %vm387, %v538, %v560
    %v587 = vsel %vm387, %v539, %v562
    %v588 = vsel %vm387, %v540, %v564
    %v589 = vsel %vm392, %v585, %v574
    %v590 = vsel %vm392, %v586, %v576
    %v591 = vsel %vm392, %v587, %v578
    %v592 = vsel %vm392, %v588, %v580
    %v593 = vld [vmem:[%s6] sm:$0xff]
    %v594 = vld [vmem:[%s6 + $0x8] sm:$0xff]
    %v595 = vld [vmem:[%s6 + $0x10] sm:$0xff]
    %v596 = vld [vmem:[%s6 + $0x18] sm:$0xff]
    %v597 = vld [vmem:[%s6 + $0x20] sm:$0xff]
    %v598 = vld [vmem:[%s6 + $0x28] sm:$0x3]
    %v599 = vld [vmem:[%s7] sm:$0x1]
    %v601 = vlaneseq
    %v602 = vshrl.u32 %v601, 7
    %v603 = vsub.s32 0, %v602
    %v604 = vrot.slane %v599, %v603
    %v607 = vsel %vm410, %v589, 0
    %v610 = vsel %vm410, %v590, 0
    %v613 = vsel %vm410, %v591, 0
    %v616 = vsel %vm410, %v592, 0
    %v619 = vsel %vm423, %v598, 0
    %621 = vmatprep.subr.mxu0 0.0
    %622 = vmatpush1.msra.mxu0 %v593
    %623 = vmatprep.subr.mxu0 0.0
    %624 = vmatpush1.msra.mxu0 %v594
    %625 = vmatprep.subr.mxu0 0.0
    %626 = vmatpush1.msra.mxu0 %v595
    %627 = vmatprep.subr.mxu0 0.0
    %628 = vmatpush1.msra.mxu0 %v596
    %629 = vmatprep.subr.mxu0 0.0
    %630 = vmatpush1.msra.mxu0 %v597
    %631 = vmatprep.subr.mxu0 0.0
    %632 = vmatpush1.msra.mxu0 %v619
    %633 = vmatprep.subr.mxu0 0.0
    %634 = vmatpush1.msra.mxu0 0.0
    %635 = vmatprep.subr.mxu0 0.0
    %636 = vmatpush1.msra.mxu0 0.0
    %637 = vmatprep.subr.mxu0 0.0
    %638 = vmatpush1.msra.mxu0 0.0
    %639 = vmatprep.subr.mxu0 0.0
    %640 = vmatpush1.msra.mxu0 0.0
    %641 = vmatprep.subr.mxu0 0.0
    %642 = vmatpush1.msra.mxu0 0.0
    %643 = vmatprep.subr.mxu0 0.0
    %644 = vmatpush1.msra.mxu0 0.0
    %645 = vmatprep.subr.mxu0 0.0
    %646 = vmatpush1.msra.mxu0 0.0
    %647 = vmatprep.subr.mxu0 0.0
    %648 = vmatpush1.msra.mxu0 0.0
    %649 = vmatprep.subr.mxu0 0.0
    %650 = vmatpush1.msra.mxu0 0.0
    %651 = vmatprep.subr.mxu0 0.0
    %652 = vmatpush1.msra.mxu0 0.0
    %653 = vmatprep.subr.mxu0 0.0
    %654 = vmatpush1.msra.mxu0 0.0
    %655 = vmatprep.subr.mxu0 0.0
    %656 = vmatpush1.msra.mxu0 0.0
    %657 = vmatprep.subr.mxu0 0.0
    %658 = vmatpush1.msra.mxu0 0.0
    %659 = vmatprep.subr.mxu0 0.0
    %660 = vmatpush1.msra.mxu0 0.0
    %661 = vmatprep.subr.mxu0 0.0
    %662 = vmatpush1.msra.mxu0 0.0
    %663 = vmatprep.subr.mxu0 0.0
    %664 = vmatpush1.msra.mxu0 0.0
    %665 = vmatprep.subr.mxu0 0.0
    %666 = vmatpush1.msra.mxu0 0.0
    %667 = vmatprep.subr.mxu0 0.0
    %668 = vmatpush1.msra.mxu0 0.0
    %669 = vmatprep.subr.mxu0 0.0
    %670 = vmatpush1.msra.mxu0 0.0
    %671 = vmatprep.subr.mxu0 0.0
    %672 = vmatpush1.msra.mxu0 0.0
    %673 = vmatprep.subr.mxu0 0.0
    %674 = vmatpush1.msra.mxu0 0.0
    %675 = vmatprep.subr.mxu0 0.0
    %676 = vmatpush1.msra.mxu0 0.0
    %677 = vmatprep.subr.mxu0 0.0
    %678 = vmatpush1.msra.mxu0 0.0
    %679 = vmatprep.subr.mxu0 0.0
    %680 = vmatpush1.msra.mxu0 0.0
    %681 = vmatprep.subr.mxu0 0.0
    %682 = vmatpush1.msra.mxu0 0.0
    %683 = vmatprep.subr.mxu0 0.0
    %684 = vmatpush1.msra.mxu0 0.0
    %685 = vmatprep.mubr.f32.mxu0 0.0
    %686 = vmatmul.mubr.f32.gmra.mrb[0].mxu0 %v607
    %v687 = vpop.f32.mrb[0].mxu0
    %v688 = vadd.f32 %v604, %v687
    %v689 = vpop.f32.mrb[0].mxu0
    %690 = vmatprep.mubr.f32.mxu0 0.0
    %691 = vmatmul.mubr.f32.gmra.mrb[0].mxu0 %v610
    %v692 = vpop.f32.mrb[0].mxu0
    %v693 = vadd.f32 %v604, %v692
    %v694 = vpop.f32.mrb[0].mxu0
    %695 = vmatprep.mubr.f32.mxu0 0.0
    %696 = vmatmul.mubr.f32.gmra.mrb[0].mxu0 %v613
    %v697 = vpop.f32.mrb[0].mxu0
    %v698 = vadd.f32 %v604, %v697
    %v699 = vpop.f32.mrb[0].mxu0
    %700 = vmatprep.mubr.f32.mxu0 0.0
    %701 = vmatmul.mubr.f32.gmra.mrb[0].mxu0 %v616
    %v702 = vpop.f32.mrb[0].mxu0
    %v703 = vadd.f32 %v604, %v702
    %v704 = vpop.f32.mrb[0].mxu0
    %705 = vdwg.mxu0
    %vm706 = vcmp.gt.f32.partialorder %v688, 0.0
    %vm707 = vcmp.gt.f32.partialorder %v693, 0.0
    %vm708 = vcmp.gt.f32.partialorder %v698, 0.0
    %vm709 = vcmp.gt.f32.partialorder %v703, 0.0
    %v710 = vstv %s118
    %v711 = vmul.f32 %v710, %v688
    %v712 = vmul.f32 %v710, %v693
    %v713 = vmul.f32 %v710, %v698
    %v714 = vmul.f32 %v710, %v703
    %v715 = vsel %vm706, %v688, %v711
    %v716 = vsel %vm707, %v693, %v712
    %v717 = vsel %vm708, %v698, %v713
    %v718 = vsel %vm709, %v703, %v714
    %v719 = vadd.f32 %v715, %v525
    %v720 = vadd.f32 %v716, %v526
    %v721 = vadd.f32 %v717, %v527
    %v722 = vadd.f32 %v718, %v528
    %v723 = vrot.slane %v719, 7
    %v724 = vrot.slane %v720, 7
    %v725 = vrot.slane %v721, 7
    %v726 = vrot.slane %v722, 7
    %v727 = vsel %vm127, %v725, %v726
    %v728 = vsel %vm127, %v724, %v725
    %v729 = vsel %vm127, %v723, %v724
    %v730 = vsel %vm127, %v726, %v723
    %v731 = vsel %vm136, %v730, 0.0
    %v732 = vsel %vm137, %v729, 0.0
    %v733 = vsel %vm138, %v728, 0.0
    %v734 = vsel %vm139, %v727, 0.0
    %v735 = vrot.slane %v719, 1
    %v736 = vrot.slane %v720, 1
    %v737 = vrot.slane %v721, 1
    %v738 = vrot.slane %v722, 1
    %v739 = vsel %vm148, %v737, %v738
    %v740 = vsel %vm148, %v736, %v737
    %v741 = vsel %vm148, %v735, %v736
    %v742 = vsel %vm148, %v738, %v735
    %v743 = vsel %vm157, %v741, 0.0
    %v744 = vsel %vm158, %v740, 0.0
    %v745 = vsel %vm159, %v739, 0.0
    %v746 = vsel %vm160, %v742, 0.0
    %751 = vrot.lane.b32.xlu0 %v719, 14
    %v752 = vpop.permute.xlu0 %751
    %753 = vrot.lane.b32.xlu0 %v720, 14
    %v754 = vpop.permute.xlu0 %753
    %755 = vrot.lane.b32.xlu0 %v721, 14
    %v756 = vpop.permute.xlu0 %755
    %757 = vrot.lane.b32.xlu0 %v722, 14
    %v758 = vpop.permute.xlu0 %757
    %767 = vrot.lane.b32.xlu0 %v743, 28
    %v768 = vpop.permute.xlu0 %767
    %769 = vrot.lane.b32.xlu0 %v744, 28
    %v770 = vpop.permute.xlu0 %769
    %771 = vrot.lane.b32.xlu0 %v745, 28
    %v772 = vpop.permute.xlu0 %771
    %773 = vrot.lane.b32.xlu0 %v746, 28
    %v774 = vpop.permute.xlu0 %773
    %v779 = vsel %vm387, %v731, %v752
    %v780 = vsel %vm387, %v732, %v754
    %v781 = vsel %vm387, %v733, %v756
    %v782 = vsel %vm387, %v734, %v758
    %v783 = vsel %vm392, %v779, %v768
    %v784 = vsel %vm392, %v780, %v770
    %v785 = vsel %vm392, %v781, %v772
    %v786 = vsel %vm392, %v782, %v774
    %v787 = vld [vmem:[%s8] sm:$0xff]
    %v788 = vld [vmem:[%s8 + $0x8] sm:$0xff]
    %v789 = vld [vmem:[%s8 + $0x10] sm:$0xff]
    %v790 = vld [vmem:[%s8 + $0x18] sm:$0xff]
    %v791 = vld [vmem:[%s8 + $0x20] sm:$0xff]
    %v792 = vld [vmem:[%s8 + $0x28] sm:$0x3]
    %v793 = vld [vmem:[%s9] sm:$0x1]
    %v795 = vlaneseq
    %v796 = vshrl.u32 %v795, 7
    %v797 = vsub.s32 0, %v796
    %v798 = vrot.slane %v793, %v797
    %v801 = vsel %vm410, %v783, 0
    %v804 = vsel %vm410, %v784, 0
    %v807 = vsel %vm410, %v785, 0
    %v810 = vsel %vm410, %v786, 0
    %v813 = vsel %vm423, %v792, 0
    %815 = vmatprep.subr.mxu0 0.0
    %816 = vmatpush1.msra.mxu0 %v787
    %817 = vmatprep.subr.mxu0 0.0
    %818 = vmatpush1.msra.mxu0 %v788
    %819 = vmatprep.subr.mxu0 0.0
    %820 = vmatpush1.msra.mxu0 %v789
    %821 = vmatprep.subr.mxu0 0.0
    %822 = vmatpush1.msra.mxu0 %v790
    %823 = vmatprep.subr.mxu0 0.0
    %824 = vmatpush1.msra.mxu0 %v791
    %825 = vmatprep.subr.mxu0 0.0
    %826 = vmatpush1.msra.mxu0 %v813
    %827 = vmatprep.subr.mxu0 0.0
    %828 = vmatpush1.msra.mxu0 0.0
    %829 = vmatprep.subr.mxu0 0.0
    %830 = vmatpush1.msra.mxu0 0.0
    %831 = vmatprep.subr.mxu0 0.0
    %832 = vmatpush1.msra.mxu0 0.0
    %833 = vmatprep.subr.mxu0 0.0
    %834 = vmatpush1.msra.mxu0 0.0
    %835 = vmatprep.subr.mxu0 0.0
    %836 = vmatpush1.msra.mxu0 0.0
    %837 = vmatprep.subr.mxu0 0.0
    %838 = vmatpush1.msra.mxu0 0.0
    %839 = vmatprep.subr.mxu0 0.0
    %840 = vmatpush1.msra.mxu0 0.0
    %841 = vmatprep.subr.mxu0 0.0
    %842 = vmatpush1.msra.mxu0 0.0
    %843 = vmatprep.subr.mxu0 0.0
    %844 = vmatpush1.msra.mxu0 0.0
    %845 = vmatprep.subr.mxu0 0.0
    %846 = vmatpush1.msra.mxu0 0.0
    %847 = vmatprep.subr.mxu0 0.0
    %848 = vmatpush1.msra.mxu0 0.0
    %849 = vmatprep.subr.mxu0 0.0
    %850 = vmatpush1.msra.mxu0 0.0
    %851 = vmatprep.subr.mxu0 0.0
    %852 = vmatpush1.msra.mxu0 0.0
    %853 = vmatprep.subr.mxu0 0.0
    %854 = vmatpush1.msra.mxu0 0.0
    %855 = vmatprep.subr.mxu0 0.0
    %856 = vmatpush1.msra.mxu0 0.0
    %857 = vmatprep.subr.mxu0 0.0
    %858 = vmatpush1.msra.mxu0 0.0
    %859 = vmatprep.subr.mxu0 0.0
    %860 = vmatpush1.msra.mxu0 0.0
    %861 = vmatprep.subr.mxu0 0.0
    %862 = vmatpush1.msra.mxu0 0.0
    %863 = vmatprep.subr.mxu0 0.0
    %864 = vmatpush1.msra.mxu0 0.0
    %865 = vmatprep.subr.mxu0 0.0
    %866 = vmatpush1.msra.mxu0 0.0
    %867 = vmatprep.subr.mxu0 0.0
    %868 = vmatpush1.msra.mxu0 0.0
    %869 = vmatprep.subr.mxu0 0.0
    %870 = vmatpush1.msra.mxu0 0.0
    %871 = vmatprep.subr.mxu0 0.0
    %872 = vmatpush1.msra.mxu0 0.0
    %873 = vmatprep.subr.mxu0 0.0
    %874 = vmatpush1.msra.mxu0 0.0
    %875 = vmatprep.subr.mxu0 0.0
    %876 = vmatpush1.msra.mxu0 0.0
    %877 = vmatprep.subr.mxu0 0.0
    %878 = vmatpush1.msra.mxu0 0.0
    %879 = vmatprep.mubr.f32.mxu0 0.0
    %880 = vmatmul.mubr.f32.gmra.mrb[0].mxu0 %v801
    %v881 = vpop.f32.mrb[0].mxu0
    %v882 = vadd.f32 %v798, %v881
    %v883 = vpop.f32.mrb[0].mxu0
    %884 = vmatprep.mubr.f32.mxu0 0.0
    %885 = vmatmul.mubr.f32.gmra.mrb[0].mxu0 %v804
    %v886 = vpop.f32.mrb[0].mxu0
    %v887 = vadd.f32 %v798, %v886
    %v888 = vpop.f32.mrb[0].mxu0
    %889 = vmatprep.mubr.f32.mxu0 0.0
    %890 = vmatmul.mubr.f32.gmra.mrb[0].mxu0 %v807
    %v891 = vpop.f32.mrb[0].mxu0
    %v892 = vadd.f32 %v798, %v891
    %v893 = vpop.f32.mrb[0].mxu0
    %894 = vmatprep.mubr.f32.mxu0 0.0
    %895 = vmatmul.mubr.f32.gmra.mrb[0].mxu0 %v810
    %v896 = vpop.f32.mrb[0].mxu0
    %v897 = vadd.f32 %v798, %v896
    %v898 = vpop.f32.mrb[0].mxu0
    %899 = vdwg.mxu0
    %vm900 = vcmp.gt.f32.partialorder %v882, 0.0
    %vm901 = vcmp.gt.f32.partialorder %v887, 0.0
    %vm902 = vcmp.gt.f32.partialorder %v892, 0.0
    %vm903 = vcmp.gt.f32.partialorder %v897, 0.0
    %v904 = vmul.f32 %v710, %v882
    %v905 = vmul.f32 %v710, %v887
    %v906 = vmul.f32 %v710, %v892
    %v907 = vmul.f32 %v710, %v897
    %v908 = vsel %vm900, %v882, %v904
    %v909 = vsel %vm901, %v887, %v905
    %v910 = vsel %vm902, %v892, %v906
    %v911 = vsel %vm903, %v897, %v907
    %v912 = vadd.f32 %v908, %v719
    %v913 = vadd.f32 %v909, %v720
    %v914 = vadd.f32 %v910, %v721
    %v915 = vadd.f32 %v911, %v722
    %v916 = vrot.slane %v912, 7
    %v917 = vrot.slane %v913, 7
    %v918 = vrot.slane %v914, 7
    %v919 = vrot.slane %v915, 7
    %v920 = vsel %vm127, %v918, %v919
    %v921 = vsel %vm127, %v917, %v918
    %v922 = vsel %vm127, %v916, %v917
    %v923 = vsel %vm127, %v919, %v916
    %v924 = vsel %vm136, %v923, 0.0
    %v925 = vsel %vm137, %v922, 0.0
    %v926 = vsel %vm138, %v921, 0.0
    %v927 = vsel %vm139, %v920, 0.0
    %v928 = vrot.slane %v912, 1
    %v929 = vrot.slane %v913, 1
    %v930 = vrot.slane %v914, 1
    %v931 = vrot.slane %v915, 1
    %v932 = vsel %vm148, %v930, %v931
    %v933 = vsel %vm148, %v929, %v930
    %v934 = vsel %vm148, %v928, %v929
    %v935 = vsel %vm148, %v931, %v928
    %v936 = vsel %vm157, %v934, 0.0
    %v937 = vsel %vm158, %v933, 0.0
    %v938 = vsel %vm159, %v932, 0.0
    %v939 = vsel %vm160, %v935, 0.0
    %944 = vrot.lane.b32.xlu0 %v912, 14
    %v945 = vpop.permute.xlu0 %944
    %946 = vrot.lane.b32.xlu0 %v913, 14
    %v947 = vpop.permute.xlu0 %946
    %948 = vrot.lane.b32.xlu0 %v914, 14
    %v949 = vpop.permute.xlu0 %948
    %950 = vrot.lane.b32.xlu0 %v915, 14
    %v951 = vpop.permute.xlu0 %950
    %960 = vrot.lane.b32.xlu0 %v936, 28
    %v961 = vpop.permute.xlu0 %960
    %962 = vrot.lane.b32.xlu0 %v937, 28
    %v963 = vpop.permute.xlu0 %962
    %964 = vrot.lane.b32.xlu0 %v938, 28
    %v965 = vpop.permute.xlu0 %964
    %966 = vrot.lane.b32.xlu0 %v939, 28
    %v967 = vpop.permute.xlu0 %966
    %v972 = vsel %vm387, %v924, %v945
    %v973 = vsel %vm387, %v925, %v947
    %v974 = vsel %vm387, %v926, %v949
    %v975 = vsel %vm387, %v927, %v951
    %v976 = vsel %vm392, %v972, %v961
    %v977 = vsel %vm392, %v973, %v963
    %v978 = vsel %vm392, %v974, %v965
    %v979 = vsel %vm392, %v975, %v967
    %v980 = vld [vmem:[%s10] sm:$0xff]
    %v981 = vld [vmem:[%s10 + $0x8] sm:$0xff]
    %v982 = vld [vmem:[%s10 + $0x10] sm:$0xff]
    %v983 = vld [vmem:[%s10 + $0x18] sm:$0xff]
    %v984 = vld [vmem:[%s10 + $0x20] sm:$0xff]
    %v985 = vld [vmem:[%s10 + $0x28] sm:$0x3]
    %v986 = vld [vmem:[%s11] sm:$0x1]
    %v988 = vlaneseq
    %v989 = vshrl.u32 %v988, 7
    %v990 = vsub.s32 0, %v989
    %v991 = vrot.slane %v986, %v990
    %v994 = vsel %vm410, %v976, 0
    %v997 = vsel %vm410, %v977, 0
    %v1000 = vsel %vm410, %v978, 0
    %v1003 = vsel %vm410, %v979, 0
    %v1006 = vsel %vm423, %v985, 0
    %1008 = vmatprep.subr.mxu0 0.0
    %1009 = vmatpush1.msra.mxu0 %v980
    %1010 = vmatprep.subr.mxu0 0.0
    %1011 = vmatpush1.msra.mxu0 %v981
    %1012 = vmatprep.subr.mxu0 0.0
    %1013 = vmatpush1.msra.mxu0 %v982
    %1014 = vmatprep.subr.mxu0 0.0
    %1015 = vmatpush1.msra.mxu0 %v983
    %1016 = vmatprep.subr.mxu0 0.0
    %1017 = vmatpush1.msra.mxu0 %v984
    %1018 = vmatprep.subr.mxu0 0.0
    %1019 = vmatpush1.msra.mxu0 %v1006
    %1020 = vmatprep.subr.mxu0 0.0
    %1021 = vmatpush1.msra.mxu0 0.0
    %1022 = vmatprep.subr.mxu0 0.0
    %1023 = vmatpush1.msra.mxu0 0.0
    %1024 = vmatprep.subr.mxu0 0.0
    %1025 = vmatpush1.msra.mxu0 0.0
    %1026 = vmatprep.subr.mxu0 0.0
    %1027 = vmatpush1.msra.mxu0 0.0
    %1028 = vmatprep.subr.mxu0 0.0
    %1029 = vmatpush1.msra.mxu0 0.0
    %1030 = vmatprep.subr.mxu0 0.0
    %1031 = vmatpush1.msra.mxu0 0.0
    %1032 = vmatprep.subr.mxu0 0.0
    %1033 = vmatpush1.msra.mxu0 0.0
    %1034 = vmatprep.subr.mxu0 0.0
    %1035 = vmatpush1.msra.mxu0 0.0
    %1036 = vmatprep.subr.mxu0 0.0
    %1037 = vmatpush1.msra.mxu0 0.0
    %1038 = vmatprep.subr.mxu0 0.0
    %1039 = vmatpush1.msra.mxu0 0.0
    %1040 = vmatprep.subr.mxu0 0.0
    %1041 = vmatpush1.msra.mxu0 0.0
    %1042 = vmatprep.subr.mxu0 0.0
    %1043 = vmatpush1.msra.mxu0 0.0
    %1044 = vmatprep.subr.mxu0 0.0
    %1045 = vmatpush1.msra.mxu0 0.0
    %1046 = vmatprep.subr.mxu0 0.0
    %1047 = vmatpush1.msra.mxu0 0.0
    %1048 = vmatprep.subr.mxu0 0.0
    %1049 = vmatpush1.msra.mxu0 0.0
    %1050 = vmatprep.subr.mxu0 0.0
    %1051 = vmatpush1.msra.mxu0 0.0
    %1052 = vmatprep.subr.mxu0 0.0
    %1053 = vmatpush1.msra.mxu0 0.0
    %1054 = vmatprep.subr.mxu0 0.0
    %1055 = vmatpush1.msra.mxu0 0.0
    %1056 = vmatprep.subr.mxu0 0.0
    %1057 = vmatpush1.msra.mxu0 0.0
    %1058 = vmatprep.subr.mxu0 0.0
    %1059 = vmatpush1.msra.mxu0 0.0
    %1060 = vmatprep.subr.mxu0 0.0
    %1061 = vmatpush1.msra.mxu0 0.0
    %1062 = vmatprep.subr.mxu0 0.0
    %1063 = vmatpush1.msra.mxu0 0.0
    %1064 = vmatprep.subr.mxu0 0.0
    %1065 = vmatpush1.msra.mxu0 0.0
    %1066 = vmatprep.subr.mxu0 0.0
    %1067 = vmatpush1.msra.mxu0 0.0
    %1068 = vmatprep.subr.mxu0 0.0
    %1069 = vmatpush1.msra.mxu0 0.0
    %1070 = vmatprep.subr.mxu0 0.0
    %1071 = vmatpush1.msra.mxu0 0.0
    %1072 = vmatprep.mubr.f32.mxu0 0.0
    %1073 = vmatmul.mubr.f32.gmra.mrb[0].mxu0 %v994
    %v1074 = vpop.f32.mrb[0].mxu0
    %v1075 = vadd.f32 %v991, %v1074
    %v1076 = vpop.f32.mrb[0].mxu0
    %1077 = vmatprep.mubr.f32.mxu0 0.0
    %1078 = vmatmul.mubr.f32.gmra.mrb[0].mxu0 %v997
    %v1079 = vpop.f32.mrb[0].mxu0
    %v1080 = vadd.f32 %v991, %v1079
    %v1081 = vpop.f32.mrb[0].mxu0
    %1082 = vmatprep.mubr.f32.mxu0 0.0
    %1083 = vmatmul.mubr.f32.gmra.mrb[0].mxu0 %v1000
    %v1084 = vpop.f32.mrb[0].mxu0
    %v1085 = vadd.f32 %v991, %v1084
    %v1086 = vpop.f32.mrb[0].mxu0
    %1087 = vmatprep.mubr.f32.mxu0 0.0
    %1088 = vmatmul.mubr.f32.gmra.mrb[0].mxu0 %v1003
    %v1089 = vpop.f32.mrb[0].mxu0
    %v1090 = vadd.f32 %v991, %v1089
    %v1091 = vpop.f32.mrb[0].mxu0
    %1092 = vdwg.mxu0
    %v1093 = vxor.u32 %v1075, 2147483648
    %v1094 = vxor.u32 %v1080, 2147483648
    %v1095 = vxor.u32 %v1085, 2147483648
    %v1096 = vxor.u32 %v1090, 2147483648
    %v1097 = vmul.f32 %v1093, 1.442695
    %v1098 = vpow.pop %v1097
    %v1099 = vmul.f32 %v1094, 1.442695
    %v1100 = vpow.pop %v1099
    %v1101 = vmul.f32 %v1095, 1.442695
    %v1102 = vpow.pop %v1101
    %v1103 = vmul.f32 %v1096, 1.442695
    %v1104 = vpow.pop %v1103
    %v1105 = vadd.f32 %v1098, 1.0
    %v1106 = vadd.f32 %v1100, 1.0
    %v1107 = vadd.f32 %v1102, 1.0
    %v1108 = vadd.f32 %v1104, 1.0
    %v1109 = vrcp.pop %v1105
    %v1110 = vmul.f32 1.0, %v1109
    %v1111 = vrcp.pop %v1106
    %v1112 = vmul.f32 1.0, %v1111
    %v1113 = vrcp.pop %v1107
    %v1114 = vmul.f32 1.0, %v1113
    %v1115 = vrcp.pop %v1108
    %v1116 = vmul.f32 1.0, %v1115
    %1117 = vxpose.xlu0.b32.start [1/16] %v1110, 128
    %1118 = vxpose.xlu0.b32.cont [2/16] %v1112, 128
    %1119 = vxpose.xlu0.b32.cont [3/16] 0.0, 128
    %1120 = vxpose.xlu0.b32.cont [4/16] 0.0, 128
    %1121 = vxpose.xlu0.b32.cont [5/16] 0.0, 128
    %1122 = vxpose.xlu0.b32.cont [6/16] 0.0, 128
    %1123 = vxpose.xlu0.b32.cont [7/16] 0.0, 128
    %1124 = vxpose.xlu0.b32.cont [8/16] 0.0, 128
    %1125 = vxpose.xlu0.b32.cont [9/16] 0.0, 128
    %1126 = vxpose.xlu0.b32.cont [10/16] 0.0, 128
    %1127 = vxpose.xlu0.b32.cont [11/16] 0.0, 128
    %1128 = vxpose.xlu0.b32.cont [12/16] 0.0, 128
    %1129 = vxpose.xlu0.b32.cont [13/16] 0.0, 128
    %1130 = vxpose.xlu0.b32.cont [14/16] 0.0, 128
    %1131 = vxpose.xlu0.b32.cont [15/16] 0.0, 128
    %1132 = vxpose.xlu0.b32.end [16/16] 0.0, 128
    %v1133 = vpop.trf.xlu0
    %v1134 = vpop.trf.xlu0
    %v1135 = vpop.trf.xlu0
    %v1136 = vpop.trf.xlu0
    %v1137 = vpop.trf.xlu0
    %v1138 = vpop.trf.xlu0
    %v1139 = vpop.trf.xlu0
    %v1140 = vpop.trf.xlu0
    %v1141 = vpop.trf.xlu0
    %v1142 = vpop.trf.xlu0
    %v1143 = vpop.trf.xlu0
    %v1144 = vpop.trf.xlu0
    %v1145 = vpop.trf.xlu0
    %v1146 = vpop.trf.xlu0
    %v1147 = vpop.trf.xlu0
    %v1148 = vpop.trf.xlu0
    %vm1149 = vcmask 130048
    %1150 = vst.msk [vmem:[#allocation5] sm:$0xff] %vm1149, %v1133
    %1151 = vxpose.xlu0.b32.start [1/16] %v1114, 128
    %1152 = vxpose.xlu0.b32.cont [2/16] %v1116, 128
    %1153 = vxpose.xlu0.b32.cont [3/16] 0.0, 128
    %1154 = vxpose.xlu0.b32.cont [4/16] 0.0, 128
    %1155 = vxpose.xlu0.b32.cont [5/16] 0.0, 128
    %1156 = vxpose.xlu0.b32.cont [6/16] 0.0, 128
    %1157 = vxpose.xlu0.b32.cont [7/16] 0.0, 128
    %1158 = vxpose.xlu0.b32.cont [8/16] 0.0, 128
    %1159 = vxpose.xlu0.b32.cont [9/16] 0.0, 128
    %1160 = vxpose.xlu0.b32.cont [10/16] 0.0, 128
    %1161 = vxpose.xlu0.b32.cont [11/16] 0.0, 128
    %1162 = vxpose.xlu0.b32.cont [12/16] 0.0, 128
    %1163 = vxpose.xlu0.b32.cont [13/16] 0.0, 128
    %1164 = vxpose.xlu0.b32.cont [14/16] 0.0, 128
    %1165 = vxpose.xlu0.b32.cont [15/16] 0.0, 128
    %1166 = vxpose.xlu0.b32.end [16/16] 0.0, 128
    %v1167 = vpop.trf.xlu0
    %v1168 = vpop.trf.xlu0
    %v1169 = vpop.trf.xlu0
    %v1170 = vpop.trf.xlu0
    %v1171 = vpop.trf.xlu0
    %v1172 = vpop.trf.xlu0
    %v1173 = vpop.trf.xlu0
    %v1174 = vpop.trf.xlu0
    %v1175 = vpop.trf.xlu0
    %v1176 = vpop.trf.xlu0
    %v1177 = vpop.trf.xlu0
    %v1178 = vpop.trf.xlu0
    %v1179 = vpop.trf.xlu0
    %v1180 = vpop.trf.xlu0
    %v1181 = vpop.trf.xlu0
    %v1182 = vpop.trf.xlu0
    %s1183 = scalar_lea.vmem [#allocation5], 8
    %1184 = vst.msk [vmem:[%s1183] sm:$0xff] %vm1149, %v1167
    // Predicated region
    $region54: #{cnn_baseline_forward.1} parent=1 // pred_check
      _
    $region55: #{cnn_baseline_forward.1} parent=1 // pred_check_branch
      %1186 = sbr.rel (0) target = $region57
    $region56: #{cnn_baseline_forward.1} parent=1 // pred_region
      %s1188 = ssub.s32 256, 256
      %1189 = vsyncadd [#allocation3], %s1188
      %s1190 = sshll.u32 [#allocation5], 4
      %s1191 = int_to_ptr.vmem [resolvable:$true] %s1190
      %1196 = dma.vmem_to_hbm [thread:$0]  %s1191, 256, %s12, [#allocation3], 128, 128, 8
    $region57: #{cnn_baseline_forward.1} parent=1 // pred_fallthru
      _
    // Predicated region
    $region58: #{cnn_baseline_forward.1} parent=1 // pred_check
      _
    $region59: #{cnn_baseline_forward.1} parent=1 // pred_check_branch
      %1198 = sbr.rel (0) target = $region61
    $region60: #{cnn_baseline_forward.1} parent=1 // pred_region
      %1199 = dma.done [#allocation3], 256
    $region61: #{cnn_baseline_forward.1} parent=1 // pred_fallthru
      _
    %1200 = vsyncpa [#allocation3], 1
    %1201 = vsyncpa [#allocation4], 1

</llo_original>
